<compile_context>
chip_gen: v6e
topology: v6e:2x2x1
jax: 0.10.0
libtpu: 0.0.40
codegen_flags: <defaults>
</compile_context>

<pallas_src>
import functools

import jax
import jax.numpy as jnp
from jax.experimental import pallas as pl
from jax.experimental.pallas import tpu as pltpu


_S_TOTAL = 16   # batch sublane chunks in the packed layout (2 halves x 8)
_S_HALF = 8     # sublane chunks handled per grid step / per core
_N_OUTER = 2    # leading "parallel" grid axis (batch halves)


def _round_up(x: int, m: int) -> int:
    return ((x + m - 1) // m) * m


def _default_block_c(q: int, itemsize: int) -> int:
    # ~4 MiB of logical input per grid step (good amortization of the
    # ~0.35us/step overhead at v7x's 3.2 TB/s, >=85% roofline on v5e/v6e).
    per_col = (q + 1) * _S_HALF * itemsize
    return max(128, ((4 << 20) // per_col) // 128 * 128)


def _quantile_loss_kernel(pred_ref, tgt_ref, q_ref, qm1_ref, out_ref, acc_ref,
                          *, valid_c: int, block_c: int, ragged: bool):
    """One grid step: batch-half `o` (parallel), column block `i` (reduction).

    pred_ref: (Q, 8, block_c)  packed predictions (native dtype)
    tgt_ref : (8, block_c)     packed targets (native dtype)
    q_ref   : (Q, 1, 1) f32    quantiles          (resident)
    qm1_ref : (Q, 1, 1) f32    quantiles - 1      (resident)
    out_ref : (1, 1, 1) f32    per-half partial sum (written in epilogue)
    acc_ref : (Q, 8, block_c)  f32 accumulator (persists across inner steps)
    """
    i = pl.program_id(1)
    n_inner = pl.num_programs(1)

    @pl.when(i == 0)
    def _init():
        acc_ref[...] = jnp.zeros_like(acc_ref)

    p = pred_ref[...].astype(jnp.float32)      # (Q, 8, block_c)
    t = tgt_ref[...].astype(jnp.float32)       # (8, block_c) -> bcast over Q
    q = q_ref[...]                             # (Q, 1, 1)
    qm1 = qm1_ref[...]                         # (Q, 1, 1)

    e = t - p                                  # (Q, 8, block_c)
    # pinball: where(e >= 0, q*e, (q-1)*e) == max(q*e, (q-1)*e)
    loss = jnp.maximum(q * e, qm1 * e)

    if not ragged:
        # Steady state: no masking at all (batch padding is zero-filled, so
        # padded elements contribute exactly 0).
        acc_ref[...] += loss
    else:
        @pl.when(i < n_inner - 1)
        def _steady():
            acc_ref[...] += loss

        @pl.when(i == n_inner - 1)
        def _tail():
            # Only the last column block can read past the packed array; the
            # out-of-range lanes hold undefined VMEM data, so discard them
            # with a select (NOT multiply-by-mask).
            col = jax.lax.broadcasted_iota(jnp.int32, loss.shape, 2) + i * block_c
            acc_ref[...] += jnp.where(col < valid_c, loss, 0.0)

    @pl.when(i == n_inner - 1)
    def _finalize():
        # Single XLU reduce per batch-half, once, in the epilogue.
        out_ref[...] = jnp.sum(acc_ref[...]).reshape(1, 1, 1)


def quantile_loss_packed(pred_packed: jax.Array, tgt_packed: jax.Array,
                         quantiles: jax.Array, n_valid: int,
                         *, block_c: int | None = None) -> jax.Array:
    """Loss from already-packed operands (the zero-extra-HBM-traffic path).

    pred_packed: (Q, 16, C) with pred_packed[q, s, c] = predictions[s*C + c, q]
    tgt_packed : (16, C)    with tgt_packed[s, c]     = targets[s*C + c]
    Batch indices >= n_valid must be zero-padded.
    """
    Q, S, C = pred_packed.shape
    assert S == _S_TOTAL and tgt_packed.shape == (S, C)
    assert C % 128 == 0, "packed column count must be a multiple of 128"

    if block_c is None:
        block_c = _default_block_c(Q, pred_packed.dtype.itemsize)
    block_c = min(block_c, C)
    assert block_c % 128 == 0

    n_inner = pl.cdiv(C, block_c)
    ragged = (C % block_c) != 0

    # Item 7: hoist quantile prep out of the hot loop.
    q_col = quantiles.astype(jnp.float32).reshape(Q, 1, 1)
    qm1_col = q_col - 1.0

    kernel = functools.partial(_quantile_loss_kernel,
                               valid_c=C, block_c=block_c, ragged=ragged)

    bytes_in = (pred_packed.size * pred_packed.dtype.itemsize
                + tgt_packed.size * tgt_packed.dtype.itemsize + 2 * Q * 4)
    cost = pl.CostEstimate(flops=6 * Q * S * C, transcendentals=0,
                           bytes_accessed=bytes_in + _N_OUTER * 4)

    partials = pl.pallas_call(
        kernel,
        out_shape=jax.ShapeDtypeStruct((_N_OUTER, 1, 1), jnp.float32),
        grid_spec=pltpu.PrefetchScalarGridSpec(
            num_scalar_prefetch=0,
            grid=(_N_OUTER, n_inner),
            in_specs=[
                pl.BlockSpec((Q, _S_HALF, block_c), lambda o, i: (0, o, i)),
                pl.BlockSpec((_S_HALF, block_c), lambda o, i: (o, i)),
                pl.BlockSpec((Q, 1, 1), lambda o, i: (0, 0, 0)),
                pl.BlockSpec((Q, 1, 1), lambda o, i: (0, 0, 0)),
            ],
            out_specs=pl.BlockSpec((1, 1, 1), lambda o, i: (o, 0, 0)),
            scratch_shapes=[pltpu.VMEM((Q, _S_HALF, block_c), jnp.float32)],
        ),
        compiler_params=pltpu.CompilerParams(
            # Outer batch-half axis is independent (can shard across the two
            # TensorCores on v7x); inner axis is the resident-accumulator
            # reduction.
            dimension_semantics=("parallel", "arbitrary"),
        ),
        cost_estimate=cost,
    )(pred_packed, tgt_packed, q_col, qm1_col)

    # Tiny finalization in XLA: add the 2 partials, divide by the true count.
    return jnp.sum(partials) / jnp.float32(n_valid * Q)


def _pack_operands(predictions: jax.Array, targets: jax.Array):
    """Build the (Q, 16, C) / (16, C) packed operands from native (B, Q)/(B,).

    This is the single remaining producer-boundary relayout (one fused
    pad+reshape+transpose). Producers that can emit the packed layout should
    call quantile_loss_packed directly and skip it (perf item 1).
    """
    B, Q = predictions.shape
    C = _round_up(max(-(-B // _S_TOTAL), 1), 128)
    b_pad = _S_TOTAL * C - B
    if b_pad:
        predictions = jnp.pad(predictions, ((0, b_pad), (0, 0)))
        targets = jnp.pad(targets, (0, b_pad))
    pred_packed = predictions.reshape(_S_TOTAL, C, Q).transpose(2, 0, 1)  # (Q,16,C)
    tgt_packed = targets.reshape(_S_TOTAL, C)                             # (16,C)
    return pred_packed, tgt_packed


def quantile_loss(predictions: jax.Array, targets: jax.Array,
                  quantiles: jax.Array, *, block_c: int | None = None,
                  use_pallas: bool | None = None) -> jax.Array:
    """Pallas-backed quantile (pinball) loss. Returns a scalar f32."""
    if predictions.ndim == 1:
        predictions = predictions[:, None]
    B, Q = predictions.shape

    if use_pallas is None:
        use_pallas = (B * Q) >= 1024   # tiny problems: fused XLA beats a launch
    if not use_pallas:
        return quantile_loss_ref(predictions, targets, quantiles)

    pred_packed, tgt_packed = _pack_operands(predictions, targets)
    return quantile_loss_packed(pred_packed, tgt_packed, quantiles, B,
                                block_c=block_c)


def quantile_loss_ref(predictions, targets, quantiles):
    """Plain-JAX reference mirroring the PyTorch forward."""
    if predictions.ndim == 1:
        predictions = predictions[:, None]
    errors = targets[:, None].astype(jnp.float32) - predictions.astype(jnp.float32)
    q = quantiles.reshape(1, -1).astype(jnp.float32)
    loss = jnp.where(errors >= 0, q * errors, (q - 1.0) * errors)
    return jnp.mean(loss)


if __name__ == "__main__":
    # Deterministic "parameters": the quantile list from the module __init__.
    quantiles = jnp.array([0.1, 0.5, 0.9], dtype=jnp.float32)

    key = jax.random.PRNGKey(0)
    kp, kt = jax.random.split(key)
    B, Q = 4500, quantiles.shape[0]
    predictions = jax.random.normal(kp, (B, Q), dtype=jnp.float32)
    targets = jax.random.normal(kt, (B,), dtype=jnp.float32)

    ref = quantile_loss_ref(predictions, targets, quantiles)

    # Small forced block: C = 384 -> 2 inner steps with a ragged last block
    # (exercises accumulator carry, batch zero-padding and the last-block lane
    # mask) x 2 parallel batch-half partials.
    out = quantile_loss(predictions, targets, quantiles, block_c=256,
                        use_pallas=True)
    out = jax.block_until_ready(out)
    assert jnp.allclose(out, ref, rtol=1e-5, atol=1e-6), (out, ref)

    # Default (auto) block: single full-width, non-ragged inner step.
    out2 = quantile_loss(predictions, targets, quantiles, use_pallas=True)
    out2 = jax.block_until_ready(out2)
    assert jnp.allclose(out2, ref, rtol=1e-5, atol=1e-6), (out2, ref)

    print("KERNEL_OK")
</pallas_src>

<mosaic_0001>
module attributes {stable_mosaic.version = 11 : i64} {
  func.func @_quantile_loss_kernel(%arg0: i32, %arg1: i32, %arg2: memref<3x8x256xf32, #tpu.memory_space<vmem>>, %arg3: memref<8x256xf32, #tpu.memory_space<vmem>>, %arg4: memref<3x1x1xf32, #tpu.memory_space<vmem>>, %arg5: memref<3x1x1xf32, #tpu.memory_space<vmem>>, %arg6: memref<1x1x1xf32, #tpu.memory_space<vmem>>, %arg7: memref<3x8x256xf32, #tpu.memory_space<vmem>>) attributes {dimension_semantics = [#tpu.dimension_semantics<parallel>, #tpu.dimension_semantics<arbitrary>], iteration_bounds = array<i64: 2, 2>, scalar_prefetch = 0 : i64, scratch_operands = 1 : i64, tpu.core_type = #tpu.core_type<tc>, window_params = [{transform_indices = @transform_0, window_bounds = array<i64: 3, 8, 256>}, {transform_indices = @transform_1, window_bounds = array<i64: 8, 256>}, {pipeline_mode = #tpu.pipeline_mode<synchronous>, transform_indices = @transform_2, window_bounds = array<i64: 3, 1, 1>}, {pipeline_mode = #tpu.pipeline_mode<synchronous>, transform_indices = @transform_3, window_bounds = array<i64: 3, 1, 1>}, {transform_indices = @transform_4, window_bounds = array<i64: 1, 1, 1>}]} {
    %c0_i32 = arith.constant 0 : i32
    %0 = arith.cmpi eq, %arg1, %c0_i32 : i32
    %1 = arith.extui %0 : i1 to i32
    %c0_i32_0 = arith.constant 0 : i32
    %2 = arith.cmpi ne, %1, %c0_i32_0 : i32
    scf.if %2 {
      %cst = arith.constant 0.000000e+00 : f32
      %24 = vector.broadcast %cst : f32 to vector<3x8x256xf32>
      %c0_16 = arith.constant 0 : index
      %c0_17 = arith.constant 0 : index
      %c0_18 = arith.constant 0 : index
      %25 = vector.load %arg7[%c0_16, %c0_17, %c0_18] : memref<3x8x256xf32, #tpu.memory_space<vmem>>, vector<3x8x256xf32>
      tpu.vector_store %arg7[%c0_16, %c0_17, %c0_18], %24 {strides = array<i32>} : memref<3x8x256xf32, #tpu.memory_space<vmem>>, vector<3x8x256xf32>,
    } else {
    }
    %c0 = arith.constant 0 : index
    %c0_1 = arith.constant 0 : index
    %c0_2 = arith.constant 0 : index
    %3 = vector.load %arg2[%c0, %c0_1, %c0_2] : memref<3x8x256xf32, #tpu.memory_space<vmem>>, vector<3x8x256xf32>
    %c0_3 = arith.constant 0 : index
    %c0_4 = arith.constant 0 : index
    %4 = vector.load %arg3[%c0_3, %c0_4] : memref<8x256xf32, #tpu.memory_space<vmem>>, vector<8x256xf32>
    %c0_5 = arith.constant 0 : index
    %c0_6 = arith.constant 0 : index
    %c0_7 = arith.constant 0 : index
    %5 = vector.load %arg4[%c0_5, %c0_6, %c0_7] : memref<3x1x1xf32, #tpu.memory_space<vmem>>, vector<3x1x1xf32>
    %c0_8 = arith.constant 0 : index
    %c0_9 = arith.constant 0 : index
    %c0_10 = arith.constant 0 : index
    %6 = vector.load %arg5[%c0_8, %c0_9, %c0_10] : memref<3x1x1xf32, #tpu.memory_space<vmem>>, vector<3x1x1xf32>
    %7 = vector.shape_cast %4 : vector<8x256xf32> to vector<1x8x256xf32>
    %8 = vector.broadcast %7 : vector<1x8x256xf32> to vector<3x8x256xf32>
    %9 = arith.subf %8, %3 : vector<3x8x256xf32>
    %10 = vector.broadcast %5 : vector<3x1x1xf32> to vector<3x8x256xf32>
    %11 = arith.mulf %10, %9 : vector<3x8x256xf32>
    %12 = vector.broadcast %6 : vector<3x1x1xf32> to vector<3x8x256xf32>
    %13 = arith.mulf %12, %9 : vector<3x8x256xf32>
    %14 = arith.maximumf %11, %13 : vector<3x8x256xf32>
    %c1_i32 = arith.constant 1 : i32
    %15 = arith.cmpi slt, %arg1, %c1_i32 : i32
    %16 = arith.extui %15 : i1 to i32
    %c0_i32_11 = arith.constant 0 : i32
    %17 = arith.cmpi ne, %16, %c0_i32_11 : i32
    scf.if %17 {
      %c0_16 = arith.constant 0 : index
      %c0_17 = arith.constant 0 : index
      %c0_18 = arith.constant 0 : index
      %24 = vector.load %arg7[%c0_16, %c0_17, %c0_18] : memref<3x8x256xf32, #tpu.memory_space<vmem>>, vector<3x8x256xf32>
      %25 = arith.addf %24, %14 : vector<3x8x256xf32>
      %c0_19 = arith.constant 0 : index
      %c0_20 = arith.constant 0 : index
      %c0_21 = arith.constant 0 : index
      %26 = vector.load %arg7[%c0_19, %c0_20, %c0_21] : memref<3x8x256xf32, #tpu.memory_space<vmem>>, vector<3x8x256xf32>
      tpu.vector_store %arg7[%c0_19, %c0_20, %c0_21], %25 {strides = array<i32>} : memref<3x8x256xf32, #tpu.memory_space<vmem>>, vector<3x8x256xf32>,
    } else {
    }
    %c1_i32_12 = arith.constant 1 : i32
    %18 = arith.cmpi eq, %arg1, %c1_i32_12 : i32
    %19 = arith.extui %18 : i1 to i32
    %c0_i32_13 = arith.constant 0 : i32
    %20 = arith.cmpi ne, %19, %c0_i32_13 : i32
    scf.if %20 {
      %24 = tpu.iota {dimensions = array<i32: 2>} : vector<3x8x256xi32>
      %c256_i32 = arith.constant 256 : i32
      %25 = arith.muli %arg1, %c256_i32 : i32
      %26 = vector.broadcast %25 : i32 to vector<3x8x256xi32>
      %27 = arith.addi %24, %26 : vector<3x8x256xi32>
      %c0_16 = arith.constant 0 : index
      %c0_17 = arith.constant 0 : index
      %c0_18 = arith.constant 0 : index
      %28 = vector.load %arg7[%c0_16, %c0_17, %c0_18] : memref<3x8x256xf32, #tpu.memory_space<vmem>>, vector<3x8x256xf32>
      %c384_i32 = arith.constant 384 : i32
      %29 = vector.broadcast %c384_i32 : i32 to vector<3x8x256xi32>
      %30 = arith.cmpi slt, %27, %29 : vector<3x8x256xi32>
      %cst = arith.constant 0.000000e+00 : f32
      %31 = vector.broadcast %cst : f32 to vector<3x8x256xf32>
      %32 = arith.select %30, %14, %31 : vector<3x8x256xi1>, vector<3x8x256xf32>
      %33 = arith.addf %28, %32 : vector<3x8x256xf32>
      %c0_19 = arith.constant 0 : index
      %c0_20 = arith.constant 0 : index
      %c0_21 = arith.constant 0 : index
      %34 = vector.load %arg7[%c0_19, %c0_20, %c0_21] : memref<3x8x256xf32, #tpu.memory_space<vmem>>, vector<3x8x256xf32>
      tpu.vector_store %arg7[%c0_19, %c0_20, %c0_21], %33 {strides = array<i32>} : memref<3x8x256xf32, #tpu.memory_space<vmem>>, vector<3x8x256xf32>,
    } else {
    }
    %c1_i32_14 = arith.constant 1 : i32
    %21 = arith.cmpi eq, %arg1, %c1_i32_14 : i32
    %22 = arith.extui %21 : i1 to i32
    %c0_i32_15 = arith.constant 0 : i32
    %23 = arith.cmpi ne, %22, %c0_i32_15 : i32
    scf.if %23 {
      %c0_16 = arith.constant 0 : index
      %c0_17 = arith.constant 0 : index
      %c0_18 = arith.constant 0 : index
      %24 = vector.load %arg7[%c0_16, %c0_17, %c0_18] : memref<3x8x256xf32, #tpu.memory_space<vmem>>, vector<3x8x256xf32>
      %25 = vector.shape_cast %24 : vector<3x8x256xf32> to vector<1x3x8x256xf32>
      %cst = arith.constant dense<0.000000e+00> : vector<1xf32>
      %26 = vector.multi_reduction <add>, %25, %cst [1, 2, 3] : vector<1x3x8x256xf32> to vector<1xf32>
      %27 = vector.shape_cast %26 : vector<1xf32> to vector<1x1x1x1xf32>
      %28 = vector.extract %27[0, 0, 0, 0] : f32 from vector<1x1x1x1xf32>
      %29 = vector.broadcast %28 : f32 to vector<1x1x1xf32>
      %c0_19 = arith.constant 0 : index
      %c0_20 = arith.constant 0 : index
      %c0_21 = arith.constant 0 : index
      %30 = vector.load %arg6[%c0_19, %c0_20, %c0_21] : memref<1x1x1xf32, #tpu.memory_space<vmem>>, vector<1x1x1xf32>
      tpu.vector_store %arg6[%c0_19, %c0_20, %c0_21], %29 {strides = array<i32>} : memref<1x1x1xf32, #tpu.memory_space<vmem>>, vector<1x1x1xf32>,
    } else {
    }
    return
  }
  func.func @transform_0(%arg0: i32, %arg1: i32) -> (i32, i32, i32) {
    %c0_i32 = arith.constant 0 : i32
    %c0_i32_0 = arith.constant 0 : i32
    return %c0_i32, %arg0, %arg1 : i32, i32, i32
  }
  func.func @transform_1(%arg0: i32, %arg1: i32) -> (i32, i32) {
    %c0_i32 = arith.constant 0 : i32
    return %arg0, %arg1 : i32, i32
  }
  func.func @transform_2(%arg0: i32, %arg1: i32) -> (i32, i32, i32) {
    %c0_i32 = arith.constant 0 : i32
    %c0_i32_0 = arith.constant 0 : i32
    %c0_i32_1 = arith.constant 0 : i32
    %c0_i32_2 = arith.constant 0 : i32
    return %c0_i32, %c0_i32_0, %c0_i32_1 : i32, i32, i32
  }
  func.func @transform_3(%arg0: i32, %arg1: i32) -> (i32, i32, i32) {
    %c0_i32 = arith.constant 0 : i32
    %c0_i32_0 = arith.constant 0 : i32
    %c0_i32_1 = arith.constant 0 : i32
    %c0_i32_2 = arith.constant 0 : i32
    return %c0_i32, %c0_i32_0, %c0_i32_1 : i32, i32, i32
  }
  func.func @transform_4(%arg0: i32, %arg1: i32) -> (i32, i32, i32) {
    %c0_i32 = arith.constant 0 : i32
    %c0_i32_0 = arith.constant 0 : i32
    %c0_i32_1 = arith.constant 0 : i32
    return %arg0, %c0_i32, %c0_i32_0 : i32, i32, i32
  }
}

</mosaic_0001>

<llo_original>
// kernel: tpu_custom_call.1
$region0: #{tpu_custom_call.1}
  #allocation0 [shape = 'u32[]', space=smem, size = 0x4, offset = 0x4, fixed_abs, tag = 'smem constant byte address 0x4 - core index']
  #allocation1 [shape = 'u32[144,128]{1,0:T(1,128)}', space=vmem, size = 0x12000, scoped, tag = 'internal scratch']
  #allocation2 [shape = 'f32[3,8,256]{2,1,0:T(8,128)}', space=vmem, size = 0x6000, scoped, tag = 'scratch operand']
  %s0 = inlined_call_operand.hbm [shape: f32[3,16,384], index: 0, kind: input, shape index: {}]
  %s1 = inlined_call_operand.hbm [shape: f32[16,384], index: 1, kind: input, shape index: {}]
  %s2 = inlined_call_operand.vmem [shape: f32[3,1,1], index: 2, kind: input, shape index: {}]
  %s3 = inlined_call_operand.vmem [shape: f32[3,1,1], index: 3, kind: input, shape index: {}]
  %s4 = inlined_call_operand.vmem [shape: f32[2,1,1], index: 4, kind: output, shape index: {}]
  %s5 = sld [smem:[#allocation0]]
  $region69: #{tpu_custom_call.1} parent=0
    _
  %s7 = ssub.s32 1, %s5
  %s8 = scalar_select 0, %s7, %s5
  $region1: #{tpu_custom_call.1} parent=0
    #allocation3 [shape = 'u8[49152]{0}', space=vmem, size = 0xc000, scoped, tag = 'input window, operand 0']
    #allocation4 [shape = 's32[2]{0}', space=sflag, size = 0x8, scoped, tag = 'scoped memory for tpu_custom_call.1']
    #allocation5 [shape = 'u8[16384]{0}', space=vmem, size = 0x4000, scoped, tag = 'input window, operand 1']
    #allocation6 [shape = 's32[2]{0}', space=sflag, size = 0x8, scoped, tag = 'scoped memory for tpu_custom_call.1']
    %9 = vsyncpa [#allocation4], 0
    %s10 = scalar_lea.sflag [#allocation4], 1
    %11 = vsyncpa %s10, 0
    %12 = vsyncpa [#allocation6], 0
    %s13 = scalar_lea.sflag [#allocation6], 1
    %14 = vsyncpa %s13, 0
    loop: start=0, step=1, limit=6
    $region2: #{tpu_custom_call.1} parent=1 // loop_pre_header
      _
    $region3: #{tpu_custom_call.1} parent=1 // loop_header
      %s16 = sphi 0, %s20
      %p17 = scmp.ge.s32.totalorder %s16, 6
      %s23 = sphi 0, %s35
      %s24 = sphi 0, %s31
      %s25 = sphi 0, %s23
      %s26 = sphi 0, %s24
      %s27 = sphi 0, %s25
      %s28 = sphi 0, %s26
      %s40 = sphi 0, %s42
      %s43 = sphi 0, %s40
      %s44 = sphi 0, %s43
      %s60 = sphi 0, %s44
      %s68 = sphi 0, %s70
      %s71 = sphi 0, %s68
      %s72 = sphi 0, %s71
      %s88 = sphi 0, %s72
      %s92 = sphi 0, %s92
      %s94 = sphi 0, %s92
      %s95 = sphi 0, %s94
      %s109 = sphi 0, %s95
      %s113 = sphi 0, %s113
      %s115 = sphi 0, %s113
      %s116 = sphi 0, %s115
      %s130 = sphi 0, %s116
      %s136 = sphi 0, %s138
      %s139 = sphi 0, %s136
      %s140 = sphi 0, %s139
      %s156 = sphi 0, %s140
    $region4: #{tpu_custom_call.1} parent=1 // loop_header_branch
      %19 = sbr.rel (%p17) target = $region8
    $region5: #{tpu_custom_call.1} parent=1 // loop_body
      %s21 = ssub.s32 %s16, 1
      %s22 = ssub.s32 %s16, 2
      %s29 = sadd.s32 1, %s24
      %p30 = scmp.ge.s32.totalorder %s29, 2
      %s31 = scalar_select %p30, 0, %s29
      %s32 = sadd.s32 1, %s23
      %s33 = scalar_select %p30, %s32, %s23
      %p34 = scmp.ge.s32.totalorder %s33, 2
      %s35 = scalar_select %p34, 0, %s33
      %s36 = ssub.s32 %s23, %s35
      %s37 = ssub.s32 %s24, %s31
      %s38 = sor.u32 %s36, %s37
      %p39 = scmp.eq.s32.totalorder %s38, 0
      %s41 = sadd.s32 %s40, 1
      %s42 = scalar_select %p39, %s40, %s41
      %p45 = pneg %p39
      %p46 = scmp.eq.s32.totalorder %s16, 3
      %p47 = por %p45, %p46
      %p48 = scmp.ne.s32.totalorder %s40, %s43
      %p49 = scmp.eq.s32.totalorder %s16, 0
      %p50 = por %p48, %p49
      %p51 = scmp.ne.s32.totalorder %s40, %s43
      %p52 = scmp.eq.s32.totalorder %s21, 3
      %p53 = por %p51, %p52
      %p54 = scmp.ne.s32.totalorder %s43, %s44
      %p55 = scmp.eq.s32.totalorder %s21, 0
      %p56 = por %p54, %p55
      %p57 = scmp.ne.s32.totalorder %s43, %s44
      %p58 = scmp.eq.s32.totalorder %s22, 3
      %p59 = por %p57, %p58
      %p61 = scmp.ne.s32.totalorder %s44, %s60
      %p62 = scmp.eq.s32.totalorder %s22, 0
      %p63 = por %p61, %p62
      %s64 = ssub.s32 %s23, %s35
      %s65 = ssub.s32 %s24, %s31
      %s66 = sor.u32 %s64, %s65
      %p67 = scmp.eq.s32.totalorder %s66, 0
      %s69 = sadd.s32 %s68, 1
      %s70 = scalar_select %p67, %s68, %s69
      %p73 = pneg %p67
      %p74 = scmp.eq.s32.totalorder %s16, 3
      %p75 = por %p73, %p74
      %p76 = scmp.ne.s32.totalorder %s68, %s71
      %p77 = scmp.eq.s32.totalorder %s16, 0
      %p78 = por %p76, %p77
      %p79 = scmp.ne.s32.totalorder %s68, %s71
      %p80 = scmp.eq.s32.totalorder %s21, 3
      %p81 = por %p79, %p80
      %p82 = scmp.ne.s32.totalorder %s71, %s72
      %p83 = scmp.eq.s32.totalorder %s21, 0
      %p84 = por %p82, %p83
      %p85 = scmp.ne.s32.totalorder %s71, %s72
      %p86 = scmp.eq.s32.totalorder %s22, 3
      %p87 = por %p85, %p86
      %p89 = scmp.ne.s32.totalorder %s72, %s88
      %p90 = scmp.eq.s32.totalorder %s22, 0
      %p91 = por %p89, %p90
      %s93 = sadd.s32 %s92, 1
      %p96 = scmp.eq.s32.totalorder %s16, 3
      %p97 = scmp.ne.s32.totalorder %s92, %s94
      %p98 = scmp.eq.s32.totalorder %s16, 0
      %p99 = por %p97, %p98
      %p100 = scmp.ne.s32.totalorder %s92, %s94
      %p101 = scmp.eq.s32.totalorder %s21, 3
      %p102 = por %p100, %p101
      %p103 = scmp.ne.s32.totalorder %s94, %s95
      %p104 = scmp.eq.s32.totalorder %s21, 0
      %p105 = por %p103, %p104
      %p106 = scmp.ne.s32.totalorder %s94, %s95
      %p107 = scmp.eq.s32.totalorder %s22, 3
      %p108 = por %p106, %p107
      %p110 = scmp.ne.s32.totalorder %s95, %s109
      %p111 = scmp.eq.s32.totalorder %s22, 0
      %p112 = por %p110, %p111
      %s114 = sadd.s32 %s113, 1
      %p117 = scmp.eq.s32.totalorder %s16, 3
      %p118 = scmp.ne.s32.totalorder %s113, %s115
      %p119 = scmp.eq.s32.totalorder %s16, 0
      %p120 = por %p118, %p119
      %p121 = scmp.ne.s32.totalorder %s113, %s115
      %p122 = scmp.eq.s32.totalorder %s21, 3
      %p123 = por %p121, %p122
      %p124 = scmp.ne.s32.totalorder %s115, %s116
      %p125 = scmp.eq.s32.totalorder %s21, 0
      %p126 = por %p124, %p125
      %p127 = scmp.ne.s32.totalorder %s115, %s116
      %p128 = scmp.eq.s32.totalorder %s22, 3
      %p129 = por %p127, %p128
      %p131 = scmp.ne.s32.totalorder %s116, %s130
      %p132 = scmp.eq.s32.totalorder %s22, 0
      %p133 = por %p131, %p132
      %s134 = ssub.s32 %s23, %s35
      %p135 = scmp.eq.s32.totalorder %s134, 0
      %s137 = sadd.s32 %s136, 1
      %s138 = scalar_select %p135, %s136, %s137
      %p141 = pneg %p135
      %p142 = scmp.eq.s32.totalorder %s16, 3
      %p143 = por %p141, %p142
      %p144 = scmp.ne.s32.totalorder %s136, %s139
      %p145 = scmp.eq.s32.totalorder %s16, 0
      %p146 = por %p144, %p145
      %p147 = scmp.ne.s32.totalorder %s136, %s139
      %p148 = scmp.eq.s32.totalorder %s21, 3
      %p149 = por %p147, %p148
      %p150 = scmp.ne.s32.totalorder %s139, %s140
      %p151 = scmp.eq.s32.totalorder %s21, 0
      %p152 = por %p150, %p151
      %p153 = scmp.ne.s32.totalorder %s139, %s140
      %p154 = scmp.eq.s32.totalorder %s22, 3
      %p155 = por %p153, %p154
      %p157 = scmp.ne.s32.totalorder %s140, %s156
      %p158 = scmp.eq.s32.totalorder %s22, 0
      %p159 = por %p157, %p158
      %p160 = scmp.le.s32.totalorder 1, %s16
      %p161 = scmp.lt.s32.totalorder %s16, 5
      %p162 = pnand %p160, %p161
      %p163 = pneg %p162
      // Predicated region
      $region9: #{tpu_custom_call.1} parent=5 // pred_check
        _
      $region10: #{tpu_custom_call.1} parent=5 // pred_check_branch
        %165 = sbr.rel (%p162) target = $region12
      $region11: #{tpu_custom_call.1} parent=5 // pred_region
        %s166 = ssub.s32 %s16, 1
        // Predicated region
        $region13: #{tpu_custom_call.1} parent=11 // pred_check
          %p167 = pneg %p105
        $region14: #{tpu_custom_call.1} parent=11 // pred_check_branch
          %169 = sbr.rel (%p167) target = $region16
        $region15: #{tpu_custom_call.1} parent=11 // pred_region
          _
        $region16: #{tpu_custom_call.1} parent=11 // pred_fallthru
          _
        // Predicated region
        $region17: #{tpu_custom_call.1} parent=11 // pred_check
          %p170 = pneg %p126
        $region18: #{tpu_custom_call.1} parent=11 // pred_check_branch
          %172 = sbr.rel (%p170) target = $region20
        $region19: #{tpu_custom_call.1} parent=11 // pred_region
          _
        $region20: #{tpu_custom_call.1} parent=11 // pred_fallthru
          _
      $region12: #{tpu_custom_call.1} parent=5 // pred_fallthru
        _
      %p173 = scmp.lt.s32.totalorder %s16, 4
      // Predicated region
      $region21: #{tpu_custom_call.1} parent=5 // pred_check
        %p174 = pneg %p173
      $region22: #{tpu_custom_call.1} parent=5 // pred_check_branch
        %176 = sbr.rel (%p174) target = $region24
      $region23: #{tpu_custom_call.1} parent=5 // pred_region
        // Predicated region
        $region25: #{tpu_custom_call.1} parent=23 // pred_check
          %p177 = pneg %p50
        $region26: #{tpu_custom_call.1} parent=23 // pred_check_branch
          %179 = sbr.rel (%p177) target = $region28
        $region27: #{tpu_custom_call.1} parent=23 // pred_region
          %s180 = sand.u32 %s40, 1
          %s181 = scalar_lea.sflag [#allocation4], %s180
          %s182 = sand.u32 %s40, 1
          %s183 = smul.addr %s182, 48
          %s184 = scalar_lea.vmem [#allocation3], %s183
          %s185 = smul.u32 2, %s24
          %s186 = ssub.s32 3, %s185
          %p187 = scmp.lt.s32.totalorder %s186, 2
          %s188 = scalar_select %p187, %s186, 2
          %s189 = smul.u32 384, %s188
          %s191 = ssub.s32 768, %s189
          %192 = vsyncadd %s181, %s191
          %p193 = scmp.ne.s32.totalorder 0, %s189
          %s194 = smul.addr %s23, 3
          %s195 = sadd.s32 %s185, %s194
          %s196 = smul.addr %s195, 128
          %s197 = scalar_lea.hbm %s0, %s196
          %s198 = smul.u32 %s188, 8
          %s199 = smul.u32 %s198, 3
          %s200 = sshll.u32 %s184, 4
          %s201 = int_to_ptr.vmem [resolvable:$true] %s200
          %s202 = sshll.u32 %s199, 4
          %206 = dma.hbm_to_vmem [thread:$0]  (%p193), %s197, %s202, %s201, %s181, 768, 256, %s198
        $region28: #{tpu_custom_call.1} parent=23 // pred_fallthru
          _
        // Predicated region
        $region29: #{tpu_custom_call.1} parent=23 // pred_check
          %p207 = pneg %p78
        $region30: #{tpu_custom_call.1} parent=23 // pred_check_branch
          %209 = sbr.rel (%p207) target = $region32
        $region31: #{tpu_custom_call.1} parent=23 // pred_region
          %s210 = sand.u32 %s68, 1
          %s211 = scalar_lea.sflag [#allocation6], %s210
          %s212 = sand.u32 %s68, 1
          %s213 = smul.addr %s212, 16
          %s214 = scalar_lea.vmem [#allocation5], %s213
          %s215 = smul.u32 2, %s24
          %s216 = ssub.s32 3, %s215
          %p217 = scmp.lt.s32.totalorder %s216, 2
          %s218 = scalar_select %p217, %s216, 2
          %s219 = smul.u32 128, %s218
          %s221 = ssub.s32 256, %s219
          %222 = vsyncadd %s211, %s221
          %p223 = scmp.ne.s32.totalorder 0, %s219
          %s224 = smul.addr %s23, 3
          %s225 = sadd.s32 %s215, %s224
          %s226 = smul.addr %s225, 128
          %s227 = scalar_lea.hbm %s1, %s226
          %s228 = smul.u32 %s218, 8
          %s229 = sshll.u32 %s228, 4
          %s230 = sshll.u32 %s214, 4
          %s231 = int_to_ptr.vmem [resolvable:$true] %s230
          %233 = dma.hbm_to_vmem [thread:$0]  (%p223), %s227, %s229, %s231, %s211
        $region32: #{tpu_custom_call.1} parent=23 // pred_fallthru
          _
      $region24: #{tpu_custom_call.1} parent=5 // pred_fallthru
        _
      %p234 = scmp.le.s32.totalorder 1, %s16
      %p235 = scmp.lt.s32.totalorder %s16, 5
      %p236 = pnand %p234, %p235
      %p237 = pneg %p236
      // Predicated region
      $region33: #{tpu_custom_call.1} parent=5 // pred_check
        _
      $region34: #{tpu_custom_call.1} parent=5 // pred_check_branch
        %239 = sbr.rel (%p236) target = $region36
      $region35: #{tpu_custom_call.1} parent=5 // pred_region
        %s240 = ssub.s32 %s16, 1
        %s241 = sand.u32 %s43, 1
        %s242 = scalar_lea.sflag [#allocation4], %s241
        %s243 = sand.u32 %s43, 1
        %s244 = smul.addr %s243, 48
        %s245 = scalar_lea.vmem [#allocation3], %s244
        // Predicated region
        $region37: #{tpu_custom_call.1} parent=35 // pred_check
          %p246 = pneg %p56
        $region38: #{tpu_custom_call.1} parent=35 // pred_check_branch
          %248 = sbr.rel (%p246) target = $region40
        $region39: #{tpu_custom_call.1} parent=35 // pred_region
          %249 = dma.done %s242, 768
        $region40: #{tpu_custom_call.1} parent=35 // pred_fallthru
          _
        %s250 = sand.u32 %s71, 1
        %s251 = scalar_lea.sflag [#allocation6], %s250
        %s252 = sand.u32 %s71, 1
        %s253 = smul.addr %s252, 16
        %s254 = scalar_lea.vmem [#allocation5], %s253
        // Predicated region
        $region41: #{tpu_custom_call.1} parent=35 // pred_check
          %p255 = pneg %p84
        $region42: #{tpu_custom_call.1} parent=35 // pred_check_branch
          %257 = sbr.rel (%p255) target = $region44
        $region43: #{tpu_custom_call.1} parent=35 // pred_region
          %258 = dma.done %s251, 256
        $region44: #{tpu_custom_call.1} parent=35 // pred_fallthru
          _
        %s259 = sand.u32 %s43, 1
        %s260 = scalar_lea.sflag [#allocation4], %s259
        %s261 = sand.u32 %s43, 1
        %s262 = smul.addr %s261, 48
        %s263 = scalar_lea.vmem [#allocation3], %s262
        %p264 = pneg %p56
        %p265 = pneg %p53
        %s266 = sand.u32 %s71, 1
        %s267 = scalar_lea.sflag [#allocation6], %s266
        %s268 = sand.u32 %s71, 1
        %s269 = smul.addr %s268, 16
        %s270 = scalar_lea.vmem [#allocation5], %s269
        %p271 = pneg %p84
        %p272 = pneg %p81
        %p273 = pneg %p105
        %p274 = pneg %p102
        %p275 = pneg %p126
        %p276 = pneg %p123
        %p277 = pneg %p152
        %p278 = pneg %p149
        %p279 = scmp.lt.s32.totalorder %s25, 1
        %s280 = scalar_select %p279, %s25, 1
        %s281 = scalar_lea.vmem %s4, %s280
        %s282 = smul.u32 2, %s26
        %s283 = ssub.s32 3, %s282
        %p284 = scmp.lt.s32.totalorder %s283, 2
        %s285 = scalar_select %p284, %s283, 2
        %s286 = smul.u32 384, %s285
        %s287 = smul.u32 2, %s26
        %s288 = ssub.s32 3, %s287
        %p289 = scmp.lt.s32.totalorder %s288, 2
        %s290 = scalar_select %p289, %s288, 2
        %s291 = smul.u32 128, %s290
        %p292 = scmp.lt.s32.totalorder %s25, 1
        %s293 = scalar_select %p292, %s25, 1
        %s294 = scalar_lea.vmem %s4, %s293
        %p295 = scmp.eq.s32.totalorder %s26, 0
        // Predicated region
        $region45: #{tpu_custom_call.1} parent=35 // pred_check
          %p296 = pneg %p295
        $region46: #{tpu_custom_call.1} parent=35 // pred_check_branch
          %298 = sbr.rel (%p296) target = $region48
        $region47: #{tpu_custom_call.1} parent=35 // pred_region
          %299 = vst [vmem:[#allocation2] sm:$0xff] 0.0
          %300 = vst [vmem:[#allocation2 + $0x8] sm:$0xff] 0.0
          %301 = vst [vmem:[#allocation2 + $0x10] sm:$0xff] 0.0
          %302 = vst [vmem:[#allocation2 + $0x18] sm:$0xff] 0.0
          %303 = vst [vmem:[#allocation2 + $0x20] sm:$0xff] 0.0
          %304 = vst [vmem:[#allocation2 + $0x28] sm:$0xff] 0.0
        $region48: #{tpu_custom_call.1} parent=35 // pred_fallthru
          _
        %v305 = vld [vmem:[%s245] sm:$0xff]
        %v306 = vld [vmem:[%s245 + $0x8] sm:$0xff]
        %v307 = vld [vmem:[%s245 + $0x10] sm:$0xff]
        %v308 = vld [vmem:[%s245 + $0x18] sm:$0xff]
        %v309 = vld [vmem:[%s245 + $0x20] sm:$0xff]
        %v310 = vld [vmem:[%s245 + $0x28] sm:$0xff]
        %v311 = vld [vmem:[%s254] sm:$0xff]
        %v312 = vld [vmem:[%s254 + $0x8] sm:$0xff]
        %v313 = vld [vmem:[%s2] sm:$0x1]
        %v314 = vld [vmem:[%s2 + $0x1] sm:$0x1]
        %v315 = vld [vmem:[%s2 + $0x2] sm:$0x1]
        %v316 = vld [vmem:[%s3] sm:$0x1]
        %v317 = vld [vmem:[%s3 + $0x1] sm:$0x1]
        %v318 = vld [vmem:[%s3 + $0x2] sm:$0x1]
        %v319 = vsub.f32 %v311, %v305
        %v320 = vsub.f32 %v312, %v306
        %v321 = vsub.f32 %v311, %v307
        %v322 = vsub.f32 %v312, %v308
        %v323 = vsub.f32 %v311, %v309
        %v324 = vsub.f32 %v312, %v310
        %v328 = vlaneseq
        %v329 = vshrl.u32 %v328, 7
        %v330 = vsub.s32 0, %v329
        %v331 = vrot.slane %v313, %v330
        %v332 = vlaneseq
        %v333 = vshrl.u32 %v332, 7
        %v334 = vsub.s32 0, %v333
        %v335 = vrot.slane %v314, %v334
        %v336 = vlaneseq
        %v337 = vshrl.u32 %v336, 7
        %v338 = vsub.s32 0, %v337
        %v339 = vrot.slane %v315, %v338
        %340 = vset.pattern.permute.xlu0 0
        %341 = vperm.xlu0 %340, %v331
        %v342 = vpop.permute.xlu0 %341
        %344 = vset.pattern.permute.xlu0 0
        %345 = vperm.xlu0 %344, %v335
        %v346 = vpop.permute.xlu0 %345
        %348 = vset.pattern.permute.xlu0 0
        %349 = vperm.xlu0 %348, %v339
        %v350 = vpop.permute.xlu0 %349
        %v352 = vmul.f32 %v342, %v319
        %v353 = vmul.f32 %v342, %v320
        %v354 = vmul.f32 %v346, %v321
        %v355 = vmul.f32 %v346, %v322
        %v356 = vmul.f32 %v350, %v323
        %v357 = vmul.f32 %v350, %v324
        %v361 = vlaneseq
        %v362 = vshrl.u32 %v361, 7
        %v363 = vsub.s32 0, %v362
        %v364 = vrot.slane %v316, %v363
        %v365 = vlaneseq
        %v366 = vshrl.u32 %v365, 7
        %v367 = vsub.s32 0, %v366
        %v368 = vrot.slane %v317, %v367
        %v369 = vlaneseq
        %v370 = vshrl.u32 %v369, 7
        %v371 = vsub.s32 0, %v370
        %v372 = vrot.slane %v318, %v371
        %373 = vset.pattern.permute.xlu0 0
        %374 = vperm.xlu0 %373, %v364
        %v375 = vpop.permute.xlu0 %374
        %377 = vset.pattern.permute.xlu0 0
        %378 = vperm.xlu0 %377, %v368
        %v379 = vpop.permute.xlu0 %378
        %381 = vset.pattern.permute.xlu0 0
        %382 = vperm.xlu0 %381, %v372
        %v383 = vpop.permute.xlu0 %382
        %v385 = vmul.f32 %v375, %v319
        %v386 = vmul.f32 %v375, %v320
        %v387 = vmul.f32 %v379, %v321
        %v388 = vmul.f32 %v379, %v322
        %v389 = vmul.f32 %v383, %v323
        %v390 = vmul.f32 %v383, %v324
        %v391 = vmax.f32 %v352, %v385
        %v392 = vmax.f32 %v353, %v386
        %v393 = vmax.f32 %v354, %v387
        %v394 = vmax.f32 %v355, %v388
        %v395 = vmax.f32 %v356, %v389
        %v396 = vmax.f32 %v357, %v390
        %p397 = scmp.lt.s32.totalorder %s26, 1
        // Predicated region
        $region49: #{tpu_custom_call.1} parent=35 // pred_check
          %p398 = pneg %p397
        $region50: #{tpu_custom_call.1} parent=35 // pred_check_branch
          %400 = sbr.rel (%p398) target = $region52
        $region51: #{tpu_custom_call.1} parent=35 // pred_region
          %v401 = vld [vmem:[#allocation2] sm:$0xff]
          %v402 = vld [vmem:[#allocation2 + $0x8] sm:$0xff]
          %v403 = vld [vmem:[#allocation2 + $0x10] sm:$0xff]
          %v404 = vld [vmem:[#allocation2 + $0x18] sm:$0xff]
          %v405 = vld [vmem:[#allocation2 + $0x20] sm:$0xff]
          %v406 = vld [vmem:[#allocation2 + $0x28] sm:$0xff]
          %v407 = vadd.f32 %v401, %v391
          %v408 = vadd.f32 %v402, %v392
          %v409 = vadd.f32 %v403, %v393
          %v410 = vadd.f32 %v404, %v394
          %v411 = vadd.f32 %v405, %v395
          %v412 = vadd.f32 %v406, %v396
          %413 = vst [vmem:[#allocation2] sm:$0xff] %v407
          %414 = vst [vmem:[#allocation2 + $0x8] sm:$0xff] %v408
          %415 = vst [vmem:[#allocation2 + $0x10] sm:$0xff] %v409
          %416 = vst [vmem:[#allocation2 + $0x18] sm:$0xff] %v410
          %417 = vst [vmem:[#allocation2 + $0x20] sm:$0xff] %v411
          %418 = vst [vmem:[#allocation2 + $0x28] sm:$0xff] %v412
        $region52: #{tpu_custom_call.1} parent=35 // pred_fallthru
          _
        %p419 = scmp.eq.s32.totalorder %s26, 1
        // Predicated region
        $region53: #{tpu_custom_call.1} parent=35 // pred_check
          %p420 = pneg %p419
        $region54: #{tpu_custom_call.1} parent=35 // pred_check_branch
          %422 = sbr.rel (%p420) target = $region56
        $region55: #{tpu_custom_call.1} parent=35 // pred_region
          %v423 = vlaneseq
          %v424 = vand.u32 %v423, 127
          %v425 = vadd.s32 %v424, 128
          %s426 = smul.u32 %s26, 256
          %v427 = vstv %s426
          %v428 = vadd.s32 %v424, %v427
          %v429 = vadd.s32 %v425, %v427
          %v430 = vld [vmem:[#allocation2] sm:$0xff]
          %v431 = vld [vmem:[#allocation2 + $0x8] sm:$0xff]
          %v432 = vld [vmem:[#allocation2 + $0x10] sm:$0xff]
          %v433 = vld [vmem:[#allocation2 + $0x18] sm:$0xff]
          %v434 = vld [vmem:[#allocation2 + $0x20] sm:$0xff]
          %v435 = vld [vmem:[#allocation2 + $0x28] sm:$0xff]
          %vm436 = vcmp.lt.s32.totalorder %v428, 384
          %vm437 = vcmp.lt.s32.totalorder %v429, 384
          %v438 = vsel %vm436, %v391, 0.0
          %v439 = vsel %vm437, %v392, 0.0
          %v440 = vsel %vm436, %v393, 0.0
          %v441 = vsel %vm437, %v394, 0.0
          %v442 = vsel %vm436, %v395, 0.0
          %v443 = vsel %vm437, %v396, 0.0
          %v444 = vadd.f32 %v430, %v438
          %v445 = vadd.f32 %v431, %v439
          %v446 = vadd.f32 %v432, %v440
          %v447 = vadd.f32 %v433, %v441
          %v448 = vadd.f32 %v434, %v442
          %v449 = vadd.f32 %v435, %v443
          %450 = vst [vmem:[#allocation2] sm:$0xff] %v444
          %451 = vst [vmem:[#allocation2 + $0x8] sm:$0xff] %v445
          %452 = vst [vmem:[#allocation2 + $0x10] sm:$0xff] %v446
          %453 = vst [vmem:[#allocation2 + $0x18] sm:$0xff] %v447
          %454 = vst [vmem:[#allocation2 + $0x20] sm:$0xff] %v448
          %455 = vst [vmem:[#allocation2 + $0x28] sm:$0xff] %v449
          %v456 = vld [vmem:[#allocation2] sm:$0xff]
          %v457 = vld [vmem:[#allocation2 + $0x8] sm:$0xff]
          %v458 = vld [vmem:[#allocation2 + $0x10] sm:$0xff]
          %v459 = vld [vmem:[#allocation2 + $0x18] sm:$0xff]
          %v460 = vld [vmem:[#allocation2 + $0x20] sm:$0xff]
          %v461 = vld [vmem:[#allocation2 + $0x28] sm:$0xff]
          %v462 = vadd.f32 %v456, %v457
          %v463 = vadd.f32 %v462, %v458
          %v464 = vadd.f32 %v463, %v459
          %v465 = vadd.f32 %v464, %v460
          %v466 = vadd.f32 %v465, %v461
          %467 = vadd.xlane.f32.xlu0 %v466
          %v468 = vpop.xlane.xlu0 %467
          %v469 = vrot.slane %v468, 4
          %v470 = vadd.f32 %v468, %v469
          %v471 = vrot.slane %v470, 2
          %v472 = vadd.f32 %v470, %v471
          %v473 = vrot.slane %v472, 1
          %v474 = vadd.f32 %v472, %v473
          %s475 = vtos %v474
          %v476 = vstv %s475
          %vm477 = vcmask 0
          %478 = vst.msk [vmem:[%s294] sm:$0x1] %vm477, %v476
        $region56: #{tpu_custom_call.1} parent=35 // pred_fallthru
          _
        %p479 = scmp.lt.s32.totalorder %s25, 1
        %s480 = scalar_select %p479, %s25, 1
        %s481 = scalar_lea.vmem %s4, %s480
        // Predicated region
        $region57: #{tpu_custom_call.1} parent=35 // pred_check
          %p482 = pneg %p149
        $region58: #{tpu_custom_call.1} parent=35 // pred_check_branch
          %484 = sbr.rel (%p482) target = $region60
        $region59: #{tpu_custom_call.1} parent=35 // pred_region
          _
        $region60: #{tpu_custom_call.1} parent=35 // pred_fallthru
          _
      $region36: #{tpu_custom_call.1} parent=5 // pred_fallthru
        _
      %p485 = scmp.le.s32.totalorder 2, %s16
      // Predicated region
      $region61: #{tpu_custom_call.1} parent=5 // pred_check
        %p486 = pneg %p485
      $region62: #{tpu_custom_call.1} parent=5 // pred_check_branch
        %488 = sbr.rel (%p486) target = $region64
      $region63: #{tpu_custom_call.1} parent=5 // pred_region
        %s489 = ssub.s32 %s16, 2
        // Predicated region
        $region65: #{tpu_custom_call.1} parent=63 // pred_check
          %p490 = pneg %p155
        $region66: #{tpu_custom_call.1} parent=63 // pred_check_branch
          %492 = sbr.rel (%p490) target = $region68
        $region67: #{tpu_custom_call.1} parent=63 // pred_region
          %p493 = scmp.lt.s32.totalorder %s27, 1
          %s494 = scalar_select %p493, %s27, 1
          %s495 = scalar_lea.vmem %s4, %s494
        $region68: #{tpu_custom_call.1} parent=63 // pred_fallthru
          _
      $region64: #{tpu_custom_call.1} parent=5 // pred_fallthru
        _
    $region6: #{tpu_custom_call.1} parent=1 // loop_footer
      %s20 = sadd.s32 1, %s16
    $region7: #{tpu_custom_call.1} parent=1 // loop_footer_branch
      %15 = sbr.rel target = $region3
    $region8: #{tpu_custom_call.1} parent=1 // loop_exit
      _
    %496 = vsyncpa [#allocation4], 1
    %s497 = scalar_lea.sflag [#allocation4], 1
    %498 = vsyncpa %s497, 1
    %499 = vsyncpa [#allocation6], 1
    %s500 = scalar_lea.sflag [#allocation6], 1
    %501 = vsyncpa %s500, 1

</llo_original>
